<compile_context>
chip_gen: v7x
topology: tpu7x:2x2x1
jax: 0.10.0
libtpu: 0.0.40
codegen_flags: <defaults>
</compile_context>

<pallas_src>
import functools

import jax
import jax.numpy as jnp
from jax.experimental import pallas as pl
from jax.experimental.pallas import tpu as pltpu


# ----------------------------------------------------------------------------
# Kernel 1: accumulate  sum_EH[d, (b,i)] += sum_n relu(E_c)[n, d] * h[n, (b,i)]
# over the client grid axis (output block is resident, axis is "arbitrary").
# Both operands and the output are lane-dense 2D; the contraction is a single
# MXU matmul per grid step.
# ----------------------------------------------------------------------------
def eh_kernel(e_ref, h_ref, sum_eh_ref, *, mxu_dtype):
    @pl.when(pl.program_id(0) == 0)
    def _init():
        sum_eh_ref[...] = jnp.zeros_like(sum_eh_ref)

    te = jnp.maximum(e_ref[...], 0.0).astype(mxu_dtype)        # (n_c, D)
    h = h_ref[...].astype(mxu_dtype)                           # (n_c, B*C_in)
    # contract over the node axis of both -> (D, B*C_in), lane-dense
    sum_eh_ref[...] += jax.lax.dot_general(
        te, h, (((0,), (0,)), ((), ())), preferred_element_type=jnp.float32)


# ----------------------------------------------------------------------------
# Kernel 2: per-client recv_fwd, node-major.
#   Z[n,(b,i)]      = h[n,(b,i)] + (relu(E) @ sum_EH)[n,(b,i)]
#   Y[(n,b),(d,i)]  = E[n,d] * Z[n,(b,i)]
#   out[(n,b),o]    = Y @ Wflat[(d,i),o]  + (E @ bias_pool)[n,o]
# written as a lane-dense (n_c, B*C_out) slab.
# ----------------------------------------------------------------------------
def recv_kernel(e_ref, h_ref, seh_ref, w_ref, b_ref, out_ref, *, mxu_dtype):
    n_c, D = e_ref.shape
    DCin, C_out = w_ref.shape                                  # (D*C_in, C_out)
    C_in = DCin // D
    B = h_ref.shape[1] // C_in

    e = e_ref[...]                                             # (n_c, D) f32
    te = jnp.maximum(e, 0.0).astype(mxu_dtype)
    h = h_ref[...]                                             # (n_c, B*C_in) f32
    seh = seh_ref[...].astype(mxu_dtype)                       # (D, B*C_in) resident

    # Z = H + relu(E) @ sum_EH   -- lane-dense, no transpose needed
    z = h + jnp.dot(te, seh, preferred_element_type=jnp.float32)   # (n_c, B*C_in)

    # Fold the D-sum into the contraction: Y[(n,b),(d,i)] = E[n,d] * Z[n,b,i]
    y = (e[:, None, :, None] * z.reshape(n_c, B, 1, C_in))     # (n_c, B, D, C_in) f32
    y = y.reshape(n_c * B, D * C_in).astype(mxu_dtype)

    out = jnp.dot(y, w_ref[...].astype(mxu_dtype),
                  preferred_element_type=jnp.float32)          # (n_c*B, C_out)

    bias = jnp.dot(e.astype(mxu_dtype), b_ref[...].astype(mxu_dtype),
                   preferred_element_type=jnp.float32)         # (n_c, C_out)

    out = out.reshape(n_c, B, C_out) + bias[:, None, :]
    out_ref[...] = out.reshape(n_c, B * C_out).astype(out_ref.dtype)


# ----------------------------------------------------------------------------
# Wrapper
# ----------------------------------------------------------------------------
def avwgcn_forward(x, node_embeddings, mask, weights_pool, bias_pool,
                   num_clients, mxu_dtype=jnp.bfloat16):
    B, N, C_in = x.shape
    D = node_embeddings.shape[1]
    C_out = weights_pool.shape[-1]
    assert N % num_clients == 0, (N, num_clients)
    n_c = N // num_clients
    # BlockSpec sublane divisibility for the node-tiled blocks.
    assert n_c % 8 == 0 or n_c == N, f"n_c={n_c} must be a multiple of 8 (TODO: pad)"

    x = x.astype(jnp.float32)
    mask = mask.astype(jnp.float32)
    e = node_embeddings.astype(jnp.float32)
    bias_pool = bias_pool.astype(jnp.float32)

    # Per-client weights flattened so the contraction axis is (d, i):
    #   wflat[k, d*C_in + i, o] = weights_pool[k, d, i, o]
    wflat = weights_pool.astype(jnp.float32).reshape(num_clients, D * C_in, C_out)

    # Node-major, lane-dense activations; the mask multiply is fused into this
    # single wrapper transpose (the mask never enters the kernels).
    #   h[n, b*C_in + i] = x[b, n, i] * mask[b, n, 0]
    h = (x * mask).transpose(1, 0, 2).reshape(N, B * C_in)

    # ---- Kernel 1: sum_EH accumulated across the client axis ----------------
    sum_eh = pl.pallas_call(
        functools.partial(eh_kernel, mxu_dtype=mxu_dtype),
        out_shape=jax.ShapeDtypeStruct((D, B * C_in), jnp.float32),
        grid=(num_clients,),
        in_specs=[
            pl.BlockSpec((n_c, D), lambda c: (c, 0)),
            pl.BlockSpec((n_c, B * C_in), lambda c: (c, 0)),
        ],
        out_specs=pl.BlockSpec((D, B * C_in), lambda c: (0, 0)),   # accumulator
        compiler_params=pltpu.CompilerParams(dimension_semantics=("arbitrary",)),
    )(e, h)

    # ---- Kernel 2: per-client graph convolution ------------------------------
    out2 = pl.pallas_call(
        functools.partial(recv_kernel, mxu_dtype=mxu_dtype),
        out_shape=jax.ShapeDtypeStruct((N, B * C_out), jnp.float32),
        grid=(num_clients,),
        in_specs=[
            pl.BlockSpec((n_c, D), lambda c: (c, 0)),
            pl.BlockSpec((n_c, B * C_in), lambda c: (c, 0)),
            pl.BlockSpec((D, B * C_in), lambda c: (0, 0)),          # resident
            pl.BlockSpec((pl.Squeezed(), D * C_in, C_out), lambda c: (c, 0, 0)),
            pl.BlockSpec((pl.Squeezed(), D, C_out), lambda c: (c, 0, 0)),
        ],
        out_specs=pl.BlockSpec((n_c, B * C_out), lambda c: (c, 0)),  # lane-dense
        compiler_params=pltpu.CompilerParams(dimension_semantics=("parallel",)),
    )(e, h, sum_eh, wflat, bias_pool)

    # Layout plumbing only: (N, B*C_out) -> (B, N, C_out).
    return out2.reshape(N, B, C_out).transpose(1, 0, 2)


# ----------------------------------------------------------------------------
# Pure-JAX reference (mirrors the PyTorch per-client loop, sprtrelu mode,
# inter_dropout = 0).  With mxu_dtype=float32 this is exactly the PyTorch math;
# with mxu_dtype=bfloat16 the matmul operands are cast at the same points as
# the kernel so the comparison only sees f32-accumulation reassociation.
# ----------------------------------------------------------------------------
def avwgcn_reference(x, node_embeddings, mask, weights_pool, bias_pool,
                     num_clients, mxu_dtype=jnp.float32):
    B, N, C_in = x.shape
    n_c = N // num_clients
    f32 = jnp.float32
    cast = lambda a: a.astype(mxu_dtype)

    h = x * mask
    te_full = jnp.maximum(node_embeddings, 0.0)

    eh_per = []
    for cid in range(num_clients):
        sl = slice(cid * n_c, (cid + 1) * n_c)
        eh_per.append(jnp.einsum("nd,bnc->bdc", cast(te_full[sl]), cast(h[:, sl, :]),
                                 preferred_element_type=f32))
    sum_eh = sum(eh_per)                                       # inter_dropout == 0

    outs = []
    for cid in range(num_clients):
        sl = slice(cid * n_c, (cid + 1) * n_c)
        e = node_embeddings[sl]
        z = h[:, sl, :] + jnp.einsum("nd,bdc->bnc", cast(te_full[sl]), cast(sum_eh),
                                     preferred_element_type=f32)
        y = jnp.einsum("nd,bni->bndi", e, z)                   # f32 outer product
        out = jnp.einsum("bndi,dio->bno", cast(y), cast(weights_pool[cid]),
                         preferred_element_type=f32)
        bias = jnp.einsum("nd,do->no", cast(e), cast(bias_pool[cid]),
                          preferred_element_type=f32)
        outs.append(out + bias[None, :, :])
    return jnp.concatenate(outs, axis=1)


if __name__ == "__main__":
    # Small shapes consistent with the module.
    B, N, C_in, C_out, D = 2, 16, 4, 8, 8
    num_clients = 2

    key = jax.random.PRNGKey(0)
    k1, k2, k3, k4, k5 = jax.random.split(key, 5)

    x = jax.random.normal(k1, (B, N, C_in), dtype=jnp.float32)
    node_embeddings = jax.random.normal(k2, (N, D), dtype=jnp.float32)
    mask = (jax.random.uniform(k3, (B, N, 1)) > 0.2).astype(jnp.float32)
    weights_pool = 0.1 * jax.random.normal(
        k4, (num_clients, D, C_in, C_out), dtype=jnp.float32)
    bias_pool = 0.1 * jax.random.normal(
        k5, (num_clients, D, C_out), dtype=jnp.float32)

    # 1) Exactness check: f32 MXU operands vs. the PyTorch-faithful reference.
    out_f32 = avwgcn_forward(x, node_embeddings, mask, weights_pool, bias_pool,
                             num_clients, mxu_dtype=jnp.float32)
    out_f32 = jax.block_until_ready(out_f32)
    ref_f32 = avwgcn_reference(x, node_embeddings, mask, weights_pool, bias_pool,
                               num_clients, mxu_dtype=jnp.float32)
    assert out_f32.shape == (B, N, C_out), out_f32.shape
    assert jnp.allclose(out_f32, ref_f32, atol=1e-4, rtol=1e-4), \
        float(jnp.max(jnp.abs(out_f32 - ref_f32)))

    # 2) Default path: bf16 MXU operands (f32 accumulation) vs. a reference
    #    with the same operand casts.
    out_bf16 = avwgcn_forward(x, node_embeddings, mask, weights_pool, bias_pool,
                              num_clients)
    out_bf16 = jax.block_until_ready(out_bf16)
    ref_bf16 = avwgcn_reference(x, node_embeddings, mask, weights_pool, bias_pool,
                                num_clients, mxu_dtype=jnp.bfloat16)
    assert out_bf16.shape == (B, N, C_out), out_bf16.shape
    assert jnp.allclose(out_bf16, ref_bf16, atol=2e-2, rtol=2e-2), \
        float(jnp.max(jnp.abs(out_bf16 - ref_bf16)))

    print("KERNEL_OK")
</pallas_src>

<mosaic_0001>
module attributes {stable_mosaic.version = 11 : i64} {
  func.func @eh_kernel(%arg0: i32, %arg1: memref<8x8xf32, #tpu.memory_space<vmem>>, %arg2: memref<8x8xf32, #tpu.memory_space<vmem>>, %arg3: memref<8x8xf32, #tpu.memory_space<vmem>>) attributes {dimension_semantics = [#tpu.dimension_semantics<arbitrary>], iteration_bounds = array<i64: 2>, scalar_prefetch = 0 : i64, scratch_operands = 0 : i64, tpu.core_type = #tpu.core_type<tc>, window_params = [{transform_indices = @transform_0, window_bounds = array<i64: 8, 8>}, {transform_indices = @transform_1, window_bounds = array<i64: 8, 8>}, {pipeline_mode = #tpu.pipeline_mode<synchronous>, transform_indices = @transform_2, window_bounds = array<i64: 8, 8>}]} {
    %c0_i32 = arith.constant 0 : i32
    %0 = arith.cmpi eq, %arg0, %c0_i32 : i32
    %1 = arith.extui %0 : i1 to i32
    %c0_i32_0 = arith.constant 0 : i32
    %2 = arith.cmpi ne, %1, %c0_i32_0 : i32
    scf.if %2 {
      %cst_9 = arith.constant 0.000000e+00 : f32
      %11 = vector.broadcast %cst_9 : f32 to vector<8x8xf32>
      %c0_10 = arith.constant 0 : index
      %c0_11 = arith.constant 0 : index
      %12 = vector.load %arg3[%c0_10, %c0_11] : memref<8x8xf32, #tpu.memory_space<vmem>>, vector<8x8xf32>
      tpu.vector_store %arg3[%c0_10, %c0_11], %11 {strides = array<i32>} : memref<8x8xf32, #tpu.memory_space<vmem>>, vector<8x8xf32>,
    } else {
    }
    %c0 = arith.constant 0 : index
    %c0_1 = arith.constant 0 : index
    %3 = vector.load %arg1[%c0, %c0_1] : memref<8x8xf32, #tpu.memory_space<vmem>>, vector<8x8xf32>
    %cst = arith.constant 0.000000e+00 : f32
    %4 = vector.broadcast %cst : f32 to vector<8x8xf32>
    %5 = arith.maximumf %3, %4 : vector<8x8xf32>
    %c0_2 = arith.constant 0 : index
    %c0_3 = arith.constant 0 : index
    %6 = vector.load %arg2[%c0_2, %c0_3] : memref<8x8xf32, #tpu.memory_space<vmem>>, vector<8x8xf32>
    %c0_4 = arith.constant 0 : index
    %c0_5 = arith.constant 0 : index
    %7 = vector.load %arg3[%c0_4, %c0_5] : memref<8x8xf32, #tpu.memory_space<vmem>>, vector<8x8xf32>
    %cst_6 = arith.constant dense<0.000000e+00> : vector<8x8xf32>
    %8 = tpu.matmul %5, %6, %cst_6 {dimension_numbers = #tpu.dot_dimension_numbers<[0], [0], [1], [1], [0, 1, 1, 1], [], []>} : vector<8x8xf32>, vector<8x8xf32>, vector<8x8xf32> -> vector<8x8xf32>
    %9 = arith.addf %7, %8 : vector<8x8xf32>
    %c0_7 = arith.constant 0 : index
    %c0_8 = arith.constant 0 : index
    %10 = vector.load %arg3[%c0_7, %c0_8] : memref<8x8xf32, #tpu.memory_space<vmem>>, vector<8x8xf32>
    tpu.vector_store %arg3[%c0_7, %c0_8], %9 {strides = array<i32>} : memref<8x8xf32, #tpu.memory_space<vmem>>, vector<8x8xf32>,
    return
  }
  func.func @transform_0(%arg0: i32) -> (i32, i32) {
    %c0_i32 = arith.constant 0 : i32
    %c0_i32_0 = arith.constant 0 : i32
    return %arg0, %c0_i32 : i32, i32
  }
  func.func @transform_1(%arg0: i32) -> (i32, i32) {
    %c0_i32 = arith.constant 0 : i32
    %c0_i32_0 = arith.constant 0 : i32
    return %arg0, %c0_i32 : i32, i32
  }
  func.func @transform_2(%arg0: i32) -> (i32, i32) {
    %c0_i32 = arith.constant 0 : i32
    %c0_i32_0 = arith.constant 0 : i32
    %c0_i32_1 = arith.constant 0 : i32
    return %c0_i32, %c0_i32_0 : i32, i32
  }
}

</mosaic_0001>

<llo_original>
// kernel: tpu_custom_call.1
$region0: #{tpu_custom_call.1}
  #allocation0 [shape = 'u32[]', space=smem, size = 0x4, offset = 0x4, fixed_abs, tag = 'smem constant byte address 0x4 - core index']
  #allocation1 [shape = 'u32[144,128]{1,0:T(1,128)}', space=vmem, size = 0x12000, scoped, tag = 'internal scratch']
  %s0 = inlined_call_operand.vmem [shape: f32[16,8], index: 0, kind: input, shape index: {}]
  %s1 = inlined_call_operand.vmem [shape: f32[16,8], index: 1, kind: input, shape index: {}]
  %s2 = inlined_call_operand.hbm [shape: f32[8,8], index: 2, kind: output, shape index: {}]
  %s3 = sld [smem:[#allocation0]]
  $region45: #{tpu_custom_call.1} parent=0
    _
  %s5 = ssub.s32 1, %s3
  %s6 = scalar_select 0, %s5, %s3
  $region1: #{tpu_custom_call.1} parent=0
    #allocation2 [shape = 'u8[4096]{0}', space=vmem, size = 0x1000, scoped, tag = 'output window, operand 0, single buffered']
    #allocation3 [shape = 's32[2]{0}', space=sflag, size = 0x8, scoped, tag = 'scoped memory for tpu_custom_call.1']
    %7 = vsyncpa [#allocation3], 0
    loop: start=0, step=1, limit=4
    $region2: #{tpu_custom_call.1} parent=1 // loop_pre_header
      _
    $region3: #{tpu_custom_call.1} parent=1 // loop_header
      %s9 = sphi 0, %s13
      %p10 = scmp.ge.s32.totalorder %s9, 4
      %s19 = sphi 0, %s21
      %s22 = sphi 0, %s19
      %s23 = sphi 0, %s22
      %s39 = sphi 0, %s23
      %s45 = sphi 0, %s47
      %s48 = sphi 0, %s45
      %s49 = sphi 0, %s48
      %s65 = sphi 0, %s49
      %s69 = sphi 0, %s69
      %s71 = sphi 0, %s69
      %s72 = sphi 0, %s71
      %s86 = sphi 0, %s72
    $region4: #{tpu_custom_call.1} parent=1 // loop_header_branch
      %12 = sbr.rel (%p10) target = $region8
    $region5: #{tpu_custom_call.1} parent=1 // loop_body
      %s14 = ssub.s32 %s9, 1
      %s15 = ssub.s32 %s9, 2
      %s16 = sadd.s32 %s9, 1
      %s17 = ssub.s32 %s9, %s16
      %p18 = scmp.eq.s32.totalorder %s17, 0
      %s20 = sadd.s32 %s19, 1
      %s21 = scalar_select %p18, %s19, %s20
      %p24 = pneg %p18
      %p25 = scmp.eq.s32.totalorder %s9, 1
      %p26 = por %p24, %p25
      %p27 = scmp.ne.s32.totalorder %s19, %s22
      %p28 = scmp.eq.s32.totalorder %s9, 0
      %p29 = por %p27, %p28
      %p30 = scmp.ne.s32.totalorder %s19, %s22
      %p31 = scmp.eq.s32.totalorder %s14, 1
      %p32 = por %p30, %p31
      %p33 = scmp.ne.s32.totalorder %s22, %s23
      %p34 = scmp.eq.s32.totalorder %s14, 0
      %p35 = por %p33, %p34
      %p36 = scmp.ne.s32.totalorder %s22, %s23
      %p37 = scmp.eq.s32.totalorder %s15, 1
      %p38 = por %p36, %p37
      %p40 = scmp.ne.s32.totalorder %s23, %s39
      %p41 = scmp.eq.s32.totalorder %s15, 0
      %p42 = por %p40, %p41
      %s43 = ssub.s32 %s9, %s16
      %p44 = scmp.eq.s32.totalorder %s43, 0
      %s46 = sadd.s32 %s45, 1
      %s47 = scalar_select %p44, %s45, %s46
      %p50 = pneg %p44
      %p51 = scmp.eq.s32.totalorder %s9, 1
      %p52 = por %p50, %p51
      %p53 = scmp.ne.s32.totalorder %s45, %s48
      %p54 = scmp.eq.s32.totalorder %s9, 0
      %p55 = por %p53, %p54
      %p56 = scmp.ne.s32.totalorder %s45, %s48
      %p57 = scmp.eq.s32.totalorder %s14, 1
      %p58 = por %p56, %p57
      %p59 = scmp.ne.s32.totalorder %s48, %s49
      %p60 = scmp.eq.s32.totalorder %s14, 0
      %p61 = por %p59, %p60
      %p62 = scmp.ne.s32.totalorder %s48, %s49
      %p63 = scmp.eq.s32.totalorder %s15, 1
      %p64 = por %p62, %p63
      %p66 = scmp.ne.s32.totalorder %s49, %s65
      %p67 = scmp.eq.s32.totalorder %s15, 0
      %p68 = por %p66, %p67
      %s70 = sadd.s32 %s69, 1
      %p73 = scmp.eq.s32.totalorder %s9, 1
      %p74 = scmp.ne.s32.totalorder %s69, %s71
      %p75 = scmp.eq.s32.totalorder %s9, 0
      %p76 = por %p74, %p75
      %p77 = scmp.ne.s32.totalorder %s69, %s71
      %p78 = scmp.eq.s32.totalorder %s14, 1
      %p79 = por %p77, %p78
      %p80 = scmp.ne.s32.totalorder %s71, %s72
      %p81 = scmp.eq.s32.totalorder %s14, 0
      %p82 = por %p80, %p81
      %p83 = scmp.ne.s32.totalorder %s71, %s72
      %p84 = scmp.eq.s32.totalorder %s15, 1
      %p85 = por %p83, %p84
      %p87 = scmp.ne.s32.totalorder %s72, %s86
      %p88 = scmp.eq.s32.totalorder %s15, 0
      %p89 = por %p87, %p88
      %p90 = scmp.le.s32.totalorder 1, %s9
      %p91 = scmp.lt.s32.totalorder %s9, 3
      %p92 = pnand %p90, %p91
      %p93 = pneg %p92
      // Predicated region
      $region9: #{tpu_custom_call.1} parent=5 // pred_check
        _
      $region10: #{tpu_custom_call.1} parent=5 // pred_check_branch
        %95 = sbr.rel (%p92) target = $region12
      $region11: #{tpu_custom_call.1} parent=5 // pred_region
        %s96 = ssub.s32 %s9, 1
      $region12: #{tpu_custom_call.1} parent=5 // pred_fallthru
        _
      %p97 = scmp.lt.s32.totalorder %s9, 2
      // Predicated region
      $region13: #{tpu_custom_call.1} parent=5 // pred_check
        %p98 = pneg %p97
      $region14: #{tpu_custom_call.1} parent=5 // pred_check_branch
        %100 = sbr.rel (%p98) target = $region16
      $region15: #{tpu_custom_call.1} parent=5 // pred_region
        // Predicated region
        $region17: #{tpu_custom_call.1} parent=15 // pred_check
          %p101 = pneg %p29
        $region18: #{tpu_custom_call.1} parent=15 // pred_check_branch
          %103 = sbr.rel (%p101) target = $region20
        $region19: #{tpu_custom_call.1} parent=15 // pred_region
          %p104 = scmp.lt.s32.totalorder %s9, 1
          %s105 = scalar_select %p104, %s9, 1
          %s106 = smul.addr %s105, 8
          %s107 = scalar_lea.vmem %s0, %s106
        $region20: #{tpu_custom_call.1} parent=15 // pred_fallthru
          _
        // Predicated region
        $region21: #{tpu_custom_call.1} parent=15 // pred_check
          %p108 = pneg %p55
        $region22: #{tpu_custom_call.1} parent=15 // pred_check_branch
          %110 = sbr.rel (%p108) target = $region24
        $region23: #{tpu_custom_call.1} parent=15 // pred_region
          %p111 = scmp.lt.s32.totalorder %s9, 1
          %s112 = scalar_select %p111, %s9, 1
          %s113 = smul.addr %s112, 8
          %s114 = scalar_lea.vmem %s1, %s113
        $region24: #{tpu_custom_call.1} parent=15 // pred_fallthru
          _
      $region16: #{tpu_custom_call.1} parent=5 // pred_fallthru
        _
      %p115 = scmp.le.s32.totalorder 1, %s9
      %p116 = scmp.lt.s32.totalorder %s9, 3
      %p117 = pnand %p115, %p116
      %p118 = pneg %p117
      // Predicated region
      $region25: #{tpu_custom_call.1} parent=5 // pred_check
        _
      $region26: #{tpu_custom_call.1} parent=5 // pred_check_branch
        %120 = sbr.rel (%p117) target = $region28
      $region27: #{tpu_custom_call.1} parent=5 // pred_region
        %s121 = ssub.s32 %s9, 1
        %p122 = scmp.lt.s32.totalorder %s14, 1
        %s123 = scalar_select %p122, %s14, 1
        %s124 = smul.addr %s123, 8
        %s125 = scalar_lea.vmem %s0, %s124
        %p126 = pneg %p35
        %p127 = pneg %p32
        %p128 = scmp.lt.s32.totalorder %s14, 1
        %s129 = scalar_select %p128, %s14, 1
        %s130 = smul.addr %s129, 8
        %s131 = scalar_lea.vmem %s1, %s130
        %p132 = pneg %p61
        %p133 = pneg %p58
        %p134 = pneg %p82
        %p135 = pneg %p79
        %p136 = scmp.lt.s32.totalorder %s14, 1
        %s137 = scalar_select %p136, %s14, 1
        %s138 = smul.addr %s137, 8
        %s139 = scalar_lea.vmem %s0, %s138
        %p140 = scmp.lt.s32.totalorder %s14, 1
        %s141 = scalar_select %p140, %s14, 1
        %s142 = smul.addr %s141, 8
        %s143 = scalar_lea.vmem %s1, %s142
        %p144 = scmp.eq.s32.totalorder %s14, 0
        // Predicated region
        $region29: #{tpu_custom_call.1} parent=27 // pred_check
          %p145 = pneg %p144
        $region30: #{tpu_custom_call.1} parent=27 // pred_check_branch
          %147 = sbr.rel (%p145) target = $region32
        $region31: #{tpu_custom_call.1} parent=27 // pred_region
          %vm148 = vcmask 64512
          %149 = vst.msk [vmem:[#allocation2] sm:$0xff] %vm148, 0.0
        $region32: #{tpu_custom_call.1} parent=27 // pred_fallthru
          _
        %v150 = vld [vmem:[%s139] sm:$0xff]
        %v151 = vmax.f32 %v150, 0.0
        %v152 = vld [vmem:[%s143] sm:$0xff]
        %v153 = vld [vmem:[#allocation2] sm:$0xff]
        %154 = vxpose.xlu0.b32.start [1/16] %v151, 128
        %155 = vxpose.xlu0.b32.cont [2/16] 0.0, 128
        %156 = vxpose.xlu0.b32.cont [3/16] 0.0, 128
        %157 = vxpose.xlu0.b32.cont [4/16] 0.0, 128
        %158 = vxpose.xlu0.b32.cont [5/16] 0.0, 128
        %159 = vxpose.xlu0.b32.cont [6/16] 0.0, 128
        %160 = vxpose.xlu0.b32.cont [7/16] 0.0, 128
        %161 = vxpose.xlu0.b32.cont [8/16] 0.0, 128
        %162 = vxpose.xlu0.b32.cont [9/16] 0.0, 128
        %163 = vxpose.xlu0.b32.cont [10/16] 0.0, 128
        %164 = vxpose.xlu0.b32.cont [11/16] 0.0, 128
        %165 = vxpose.xlu0.b32.cont [12/16] 0.0, 128
        %166 = vxpose.xlu0.b32.cont [13/16] 0.0, 128
        %167 = vxpose.xlu0.b32.cont [14/16] 0.0, 128
        %168 = vxpose.xlu0.b32.cont [15/16] 0.0, 128
        %169 = vxpose.xlu0.b32.end [16/16] 0.0, 128
        %v170 = vpop.trf.xlu0
        %v171 = vpop.trf.xlu0
        %v172 = vpop.trf.xlu0
        %v173 = vpop.trf.xlu0
        %v174 = vpop.trf.xlu0
        %v175 = vpop.trf.xlu0
        %v176 = vpop.trf.xlu0
        %v177 = vpop.trf.xlu0
        %v178 = vpop.trf.xlu0
        %v179 = vpop.trf.xlu0
        %v180 = vpop.trf.xlu0
        %v181 = vpop.trf.xlu0
        %v182 = vpop.trf.xlu0
        %v183 = vpop.trf.xlu0
        %v184 = vpop.trf.xlu0
        %v185 = vpop.trf.xlu0
        %vm186 = vcmask 64512
        %v188 = vsel %vm186, %v170, 0
        %190 = vmatprep.subr.mxu0 0.0
        %191 = vmatpush1.msra.mxu0 %v152
        %192 = vmatprep.subr.mxu0 0.0
        %193 = vmatpush1.msra.mxu0 0.0
        %194 = vmatprep.subr.mxu0 0.0
        %195 = vmatpush1.msra.mxu0 0.0
        %196 = vmatprep.subr.mxu0 0.0
        %197 = vmatpush1.msra.mxu0 0.0
        %198 = vmatprep.subr.mxu0 0.0
        %199 = vmatpush1.msra.mxu0 0.0
        %200 = vmatprep.subr.mxu0 0.0
        %201 = vmatpush1.msra.mxu0 0.0
        %202 = vmatprep.subr.mxu0 0.0
        %203 = vmatpush1.msra.mxu0 0.0
        %204 = vmatprep.subr.mxu0 0.0
        %205 = vmatpush1.msra.mxu0 0.0
        %206 = vmatprep.subr.mxu0 0.0
        %207 = vmatpush1.msra.mxu0 0.0
        %208 = vmatprep.subr.mxu0 0.0
        %209 = vmatpush1.msra.mxu0 0.0
        %210 = vmatprep.subr.mxu0 0.0
        %211 = vmatpush1.msra.mxu0 0.0
        %212 = vmatprep.subr.mxu0 0.0
        %213 = vmatpush1.msra.mxu0 0.0
        %214 = vmatprep.subr.mxu0 0.0
        %215 = vmatpush1.msra.mxu0 0.0
        %216 = vmatprep.subr.mxu0 0.0
        %217 = vmatpush1.msra.mxu0 0.0
        %218 = vmatprep.subr.mxu0 0.0
        %219 = vmatpush1.msra.mxu0 0.0
        %220 = vmatprep.subr.mxu0 0.0
        %221 = vmatpush1.msra.mxu0 0.0
        %222 = vmatprep.subr.mxu0 0.0
        %223 = vmatpush1.msra.mxu0 0.0
        %224 = vmatprep.subr.mxu0 0.0
        %225 = vmatpush1.msra.mxu0 0.0
        %226 = vmatprep.subr.mxu0 0.0
        %227 = vmatpush1.msra.mxu0 0.0
        %228 = vmatprep.subr.mxu0 0.0
        %229 = vmatpush1.msra.mxu0 0.0
        %230 = vmatprep.subr.mxu0 0.0
        %231 = vmatpush1.msra.mxu0 0.0
        %232 = vmatprep.subr.mxu0 0.0
        %233 = vmatpush1.msra.mxu0 0.0
        %234 = vmatprep.subr.mxu0 0.0
        %235 = vmatpush1.msra.mxu0 0.0
        %236 = vmatprep.subr.mxu0 0.0
        %237 = vmatpush1.msra.mxu0 0.0
        %238 = vmatprep.subr.mxu0 0.0
        %239 = vmatpush1.msra.mxu0 0.0
        %240 = vmatprep.subr.mxu0 0.0
        %241 = vmatpush1.msra.mxu0 0.0
        %242 = vmatprep.subr.mxu0 0.0
        %243 = vmatpush1.msra.mxu0 0.0
        %244 = vmatprep.subr.mxu0 0.0
        %245 = vmatpush1.msra.mxu0 0.0
        %246 = vmatprep.subr.mxu0 0.0
        %247 = vmatpush1.msra.mxu0 0.0
        %248 = vmatprep.subr.mxu0 0.0
        %249 = vmatpush1.msra.mxu0 0.0
        %250 = vmatprep.subr.mxu0 0.0
        %251 = vmatpush1.msra.mxu0 0.0
        %252 = vmatprep.subr.mxu0 0.0
        %253 = vmatpush1.msra.mxu0 0.0
        %254 = vmatprep.mubr.f32.mxu0 0.0
        %255 = vmatmul.mubr.f32.gmra.mrb[0].mxu0 %v188
        %v256 = vpop.f32.mrb[0].mxu0
        %v257 = vadd.f32 0.0, %v256
        %v258 = vpop.f32.mrb[0].mxu0
        %259 = vdwg.mxu0
        %v260 = vadd.f32 %v153, %v257
        %261 = vst.msk [vmem:[#allocation2] sm:$0xff] %vm186, %v260
        // Predicated region
        $region33: #{tpu_custom_call.1} parent=27 // pred_check
          %p262 = pneg %p79
        $region34: #{tpu_custom_call.1} parent=27 // pred_check_branch
          %264 = sbr.rel (%p262) target = $region36
        $region35: #{tpu_custom_call.1} parent=27 // pred_region
          %s266 = ssub.s32 128, 128
          %267 = vsyncadd [#allocation3], %s266
          %s269 = sshll.u32 [#allocation2], 4
          %s270 = int_to_ptr.vmem [resolvable:$true] %s269
          %272 = dma.vmem_to_hbm [thread:$0]  %s270, 128, %s2, [#allocation3]
        $region36: #{tpu_custom_call.1} parent=27 // pred_fallthru
          _
        // Predicated region
        $region37: #{tpu_custom_call.1} parent=27 // pred_check
          %p273 = pneg %p79
        $region38: #{tpu_custom_call.1} parent=27 // pred_check_branch
          %275 = sbr.rel (%p273) target = $region40
        $region39: #{tpu_custom_call.1} parent=27 // pred_region
          %276 = dma.done [#allocation3], 128
        $region40: #{tpu_custom_call.1} parent=27 // pred_fallthru
          _
      $region28: #{tpu_custom_call.1} parent=5 // pred_fallthru
        _
      %p277 = scmp.le.s32.totalorder 2, %s9
      // Predicated region
      $region41: #{tpu_custom_call.1} parent=5 // pred_check
        %p278 = pneg %p277
      $region42: #{tpu_custom_call.1} parent=5 // pred_check_branch
        %280 = sbr.rel (%p278) target = $region44
      $region43: #{tpu_custom_call.1} parent=5 // pred_region
        %s281 = ssub.s32 %s9, 2
      $region44: #{tpu_custom_call.1} parent=5 // pred_fallthru
        _
    $region6: #{tpu_custom_call.1} parent=1 // loop_footer
      %s13 = sadd.s32 1, %s9
    $region7: #{tpu_custom_call.1} parent=1 // loop_footer_branch
      %8 = sbr.rel target = $region3
    $region8: #{tpu_custom_call.1} parent=1 // loop_exit
      _
    %282 = vsyncpa [#allocation3], 1
    %s283 = scalar_lea.sflag [#allocation3], 1
    %284 = vsyncpa %s283, 1

</llo_original>
